<compile_context>
chip_gen: v7x
topology: tpu7x:2x2x1
jax: 0.10.0
libtpu: 0.0.40
codegen_flags: <defaults>
</compile_context>

<pallas_src>
import jax
import jax.numpy as jnp
from jax.experimental import pallas as pl
from jax.experimental.pallas import tpu as pltpu


_LANES = 128
_SUBLANES = 8
_MAX_TILE_OH = 512  # measured streaming kernels reach ~85% of HBM roofline by 512 rows


def _round_up(n, m):
    return ((n + m - 1) // m) * m


def _cdiv(a, b):
    return (a + b - 1) // b


def _vmem_budget_bytes():
    """Generation-aware scoped-VMEM budget (v7x has 64 MiB/TC, v5e/v6e 128 MiB)."""
    cap = None
    try:
        cap = getattr(pltpu.get_tpu_info(), "vmem_capacity_bytes", None)
    except Exception:
        cap = None
    if not cap:
        cap = 64 * 1024 * 1024  # conservative fallback (v7x per-TC VMEM)
    return max(32 * 1024 * 1024, min(int(cap * 0.7), 100 * 1024 * 1024))


def _make_conv2d_kernel(kh, kw, w_pad, tile_oh):
    """Kernel specialized to static tap counts, padded lane width, and row tile."""

    def conv2d_kernel(w_ref, b_ref, x_ref, hal_ref, o_ref):
        # w_ref: (KH, KW) f32 SMEM, b_ref: (1,) f32 SMEM
        # x_ref: (tile_oh, w_pad)  main row band (VMEM, auto-pipelined)
        # hal_ref: (halo_rows, w_pad) rows just past the band (VMEM, auto-pipelined)
        # o_ref: (tile_oh, w_pad) output tile (lane-dense, unmasked stores)
        band = x_ref[...]  # one lane-dense load of the band
        if kh > 1:
            full = jnp.concatenate([band, hal_ref[...]], axis=0)
        else:
            full = band

        acc = None
        for i in range(kh):
            # Row tap i: sublane-offset static slice of the band+halo value.
            rows = band if i == 0 else full[i:i + tile_oh, :]
            for j in range(kw):
                if j == 0:
                    shifted = rows
                else:
                    # Bring column (q + j) into lane q: roll by -j == roll by (w_pad - j).
                    shifted = pltpu.roll(rows, shift=w_pad - j, axis=1)
                tap = shifted * w_ref[i, j]          # SMEM scalar splat (scalar slot)
                acc = tap if acc is None else acc + tap
        o_ref[...] = acc + b_ref[0]

    return conv2d_kernel


def conv2d_pallas(x, weight, bias, *, tile_oh=None):
    """x: (H, W), weight: (KH, KW), bias: (1,) -> (H-KH+1, W-KW+1), all f32."""
    x = x.astype(jnp.float32)
    weight = weight.astype(jnp.float32)
    bias = bias.astype(jnp.float32)

    h, w = x.shape
    kh, kw = weight.shape
    oh, ow = h - kh + 1, w - kw + 1
    assert oh > 0 and ow > 0, "kernel larger than input"

    # Lane-dense block width (multiple of 128).  The input/output arrays stay
    # unpadded; partial edge blocks only contaminate discarded lanes/rows.
    w_pad = _round_up(max(w, _LANES), _LANES)
    halo_rows = _round_up(max(kh - 1, 1), _SUBLANES)

    vmem_budget = _vmem_budget_bytes()

    if tile_oh is None:
        # Conservative live-block estimate per grid step: double-buffered in/out
        # (+ tiny halo) plus in-kernel temporaries (full/acc/shifted/tap) ~ 12 blocks.
        bytes_per_row = 12 * w_pad * 4
        budget_rows = max(
            _SUBLANES, (vmem_budget // bytes_per_row) // _SUBLANES * _SUBLANES
        )
        tile_oh = min(_round_up(oh, _SUBLANES), budget_rows, _MAX_TILE_OH)
        # Prefer >= 2 row tiles so v7x's two TensorCores both work on the
        # "parallel" axis (one extra ~0.35 us grid step on v5e/v6e: negligible).
        if oh > _SUBLANES:
            tile_oh = min(tile_oh, _round_up(_cdiv(oh, 2), _SUBLANES))
    tile_oh = max(halo_rows, _round_up(tile_oh, halo_rows))

    num_row_tiles = _cdiv(oh, tile_oh)
    blocks_per_tile = tile_oh // halo_rows
    # Clamp the halo block so it always starts in-bounds; whenever the clamp fires,
    # the halo rows are only ever used for output rows >= OH, which are discarded.
    max_halo_blk = (h - 1) // halo_rows

    band_spec = pl.BlockSpec((tile_oh, w_pad), lambda r: (r, 0))
    halo_spec = pl.BlockSpec(
        (halo_rows, w_pad),
        lambda r: (jnp.minimum((r + 1) * blocks_per_tile, max_halo_blk), 0),
    )
    out_spec = pl.BlockSpec((tile_oh, w_pad), lambda r: (r, 0))

    kernel = _make_conv2d_kernel(kh, kw, w_pad, tile_oh)

    cost = pl.CostEstimate(
        flops=2 * kh * kw * oh * ow,
        transcendentals=0,
        bytes_accessed=4 * (h * w + num_row_tiles * halo_rows * w + oh * ow + kh * kw + 1),
    )

    return pl.pallas_call(
        kernel,
        out_shape=jax.ShapeDtypeStruct((oh, ow), jnp.float32),
        grid=(num_row_tiles,),
        in_specs=[
            pl.BlockSpec(memory_space=pltpu.MemorySpace.SMEM),  # weight taps (scalars)
            pl.BlockSpec(memory_space=pltpu.MemorySpace.SMEM),  # bias (scalar)
            band_spec,   # main row band of x
            halo_spec,   # same array x again: the (kh-1)-row halo band
        ],
        out_specs=out_spec,
        compiler_params=pltpu.CompilerParams(
            dimension_semantics=("parallel",),
            vmem_limit_bytes=vmem_budget,
        ),
        cost_estimate=cost,
    )(weight, bias, x, x)


def conv2d_reference(x, weight, bias):
    """Pure-JAX reference mirroring the PyTorch loop implementation."""
    kh, kw = weight.shape
    oh, ow = x.shape[0] - kh + 1, x.shape[1] - kw + 1
    out = jnp.zeros((oh, ow), jnp.float32)
    for i in range(kh):
        for j in range(kw):
            out = out + x[i:i + oh, j:j + ow] * weight[i, j]
    return out + bias[0]


if __name__ == "__main__":
    key = jax.random.PRNGKey(0)
    k_x1, k_w, k_x2, k_x3 = jax.random.split(key, 4)

    # Parameters consistent with the module:
    #   weight ~ torch.rand(ksize) (uniform [0,1)),  bias = torch.zeros(1)
    KH, KW = 3, 3
    weight = jax.random.uniform(k_w, (KH, KW), dtype=jnp.float32)
    bias = jnp.zeros((1,), dtype=jnp.float32)

    # Test 1: toy module-scale shape (partial lane/row edge blocks).
    x1 = jax.random.normal(k_x1, (16, 16), dtype=jnp.float32)
    y1 = conv2d_pallas(x1, weight, bias)
    jax.block_until_ready(y1)
    assert y1.shape == (14, 14)
    assert jnp.allclose(y1, conv2d_reference(x1, weight, bias), atol=1e-5, rtol=1e-5)

    # Test 2: multi-tile grid (grid=(5,)), rolls across >1 lane vreg, clamped last halo.
    x2 = jax.random.normal(k_x2, (40, 150), dtype=jnp.float32)
    y2 = conv2d_pallas(x2, weight, bias, tile_oh=8)
    jax.block_until_ready(y2)
    assert y2.shape == (38, 148)
    assert jnp.allclose(y2, conv2d_reference(x2, weight, bias), atol=1e-5, rtol=1e-5)

    # Test 3: automatic tile sizing (>=2 parallel tiles, partial blocks in rows+lanes).
    x3 = jax.random.normal(k_x3, (120, 200), dtype=jnp.float32)
    y3 = conv2d_pallas(x3, weight, bias)
    jax.block_until_ready(y3)
    assert y3.shape == (118, 198)
    assert jnp.allclose(y3, conv2d_reference(x3, weight, bias), atol=1e-5, rtol=1e-5)

    print("KERNEL_OK")
</pallas_src>

<mosaic_0001>
module attributes {stable_mosaic.version = 11 : i64} {
  func.func @conv2d_kernel(%arg0: i32, %arg1: memref<3x3xf32, #tpu.memory_space<smem>>, %arg2: memref<1xf32, #tpu.memory_space<smem>>, %arg3: memref<8x128xf32, #tpu.memory_space<vmem>>, %arg4: memref<8x128xf32, #tpu.memory_space<vmem>>, %arg5: memref<8x128xf32, #tpu.memory_space<vmem>>) attributes {dimension_semantics = [#tpu.dimension_semantics<parallel>], iteration_bounds = array<i64: 2>, scalar_prefetch = 0 : i64, scratch_operands = 0 : i64, tpu.core_type = #tpu.core_type<tc>, window_params = [{transform_indices = @transform_0, window_bounds = array<i64: 3, 3>}, {transform_indices = @transform_1, window_bounds = array<i64: 1>}, {transform_indices = @transform_2, window_bounds = array<i64: 8, 128>}, {transform_indices = @transform_3, window_bounds = array<i64: 8, 128>}, {transform_indices = @transform_4, window_bounds = array<i64: 8, 128>}]} {
    %c0 = arith.constant 0 : index
    %c0_0 = arith.constant 0 : index
    %0 = vector.load %arg3[%c0, %c0_0] : memref<8x128xf32, #tpu.memory_space<vmem>>, vector<8x128xf32>
    %c0_1 = arith.constant 0 : index
    %c0_2 = arith.constant 0 : index
    %1 = vector.load %arg4[%c0_1, %c0_2] : memref<8x128xf32, #tpu.memory_space<vmem>>, vector<8x128xf32>
    %2 = tpu.concatenate %0, %1 in 0 : vector<8x128xf32>, vector<8x128xf32> -> vector<16x128xf32>
    %c0_3 = arith.constant 0 : index
    %c0_4 = arith.constant 0 : index
    %3 = memref.load %arg1[%c0_3, %c0_4] : memref<3x3xf32, #tpu.memory_space<smem>>
    %4 = vector.broadcast %3 : f32 to vector<8x128xf32>
    %5 = arith.mulf %0, %4 : vector<8x128xf32>
    %c127_i32 = arith.constant 127 : i32
    %6 = tpu.dynamic_rotate %0 by %c127_i32 dim 1 : vector<8x128xf32>, i32 -> vector<8x128xf32>
    %c0_5 = arith.constant 0 : index
    %c1 = arith.constant 1 : index
    %7 = memref.load %arg1[%c0_5, %c1] : memref<3x3xf32, #tpu.memory_space<smem>>
    %8 = vector.broadcast %7 : f32 to vector<8x128xf32>
    %9 = arith.mulf %6, %8 : vector<8x128xf32>
    %10 = arith.addf %5, %9 : vector<8x128xf32>
    %c126_i32 = arith.constant 126 : i32
    %11 = tpu.dynamic_rotate %0 by %c126_i32 dim 1 : vector<8x128xf32>, i32 -> vector<8x128xf32>
    %c0_6 = arith.constant 0 : index
    %c2 = arith.constant 2 : index
    %12 = memref.load %arg1[%c0_6, %c2] : memref<3x3xf32, #tpu.memory_space<smem>>
    %13 = vector.broadcast %12 : f32 to vector<8x128xf32>
    %14 = arith.mulf %11, %13 : vector<8x128xf32>
    %15 = arith.addf %10, %14 : vector<8x128xf32>
    %16 = vector.extract_strided_slice %2 {offsets = [1, 0], sizes = [8, 128], strides = [1, 1]} : vector<16x128xf32> to vector<8x128xf32>
    %c1_7 = arith.constant 1 : index
    %c0_8 = arith.constant 0 : index
    %17 = memref.load %arg1[%c1_7, %c0_8] : memref<3x3xf32, #tpu.memory_space<smem>>
    %18 = vector.broadcast %17 : f32 to vector<8x128xf32>
    %19 = arith.mulf %16, %18 : vector<8x128xf32>
    %20 = arith.addf %15, %19 : vector<8x128xf32>
    %c127_i32_9 = arith.constant 127 : i32
    %21 = tpu.dynamic_rotate %16 by %c127_i32_9 dim 1 : vector<8x128xf32>, i32 -> vector<8x128xf32>
    %c1_10 = arith.constant 1 : index
    %c1_11 = arith.constant 1 : index
    %22 = memref.load %arg1[%c1_10, %c1_11] : memref<3x3xf32, #tpu.memory_space<smem>>
    %23 = vector.broadcast %22 : f32 to vector<8x128xf32>
    %24 = arith.mulf %21, %23 : vector<8x128xf32>
    %25 = arith.addf %20, %24 : vector<8x128xf32>
    %c126_i32_12 = arith.constant 126 : i32
    %26 = tpu.dynamic_rotate %16 by %c126_i32_12 dim 1 : vector<8x128xf32>, i32 -> vector<8x128xf32>
    %c1_13 = arith.constant 1 : index
    %c2_14 = arith.constant 2 : index
    %27 = memref.load %arg1[%c1_13, %c2_14] : memref<3x3xf32, #tpu.memory_space<smem>>
    %28 = vector.broadcast %27 : f32 to vector<8x128xf32>
    %29 = arith.mulf %26, %28 : vector<8x128xf32>
    %30 = arith.addf %25, %29 : vector<8x128xf32>
    %31 = vector.extract_strided_slice %2 {offsets = [2, 0], sizes = [8, 128], strides = [1, 1]} : vector<16x128xf32> to vector<8x128xf32>
    %c2_15 = arith.constant 2 : index
    %c0_16 = arith.constant 0 : index
    %32 = memref.load %arg1[%c2_15, %c0_16] : memref<3x3xf32, #tpu.memory_space<smem>>
    %33 = vector.broadcast %32 : f32 to vector<8x128xf32>
    %34 = arith.mulf %31, %33 : vector<8x128xf32>
    %35 = arith.addf %30, %34 : vector<8x128xf32>
    %c127_i32_17 = arith.constant 127 : i32
    %36 = tpu.dynamic_rotate %31 by %c127_i32_17 dim 1 : vector<8x128xf32>, i32 -> vector<8x128xf32>
    %c2_18 = arith.constant 2 : index
    %c1_19 = arith.constant 1 : index
    %37 = memref.load %arg1[%c2_18, %c1_19] : memref<3x3xf32, #tpu.memory_space<smem>>
    %38 = vector.broadcast %37 : f32 to vector<8x128xf32>
    %39 = arith.mulf %36, %38 : vector<8x128xf32>
    %40 = arith.addf %35, %39 : vector<8x128xf32>
    %c126_i32_20 = arith.constant 126 : i32
    %41 = tpu.dynamic_rotate %31 by %c126_i32_20 dim 1 : vector<8x128xf32>, i32 -> vector<8x128xf32>
    %c2_21 = arith.constant 2 : index
    %c2_22 = arith.constant 2 : index
    %42 = memref.load %arg1[%c2_21, %c2_22] : memref<3x3xf32, #tpu.memory_space<smem>>
    %43 = vector.broadcast %42 : f32 to vector<8x128xf32>
    %44 = arith.mulf %41, %43 : vector<8x128xf32>
    %45 = arith.addf %40, %44 : vector<8x128xf32>
    %c0_23 = arith.constant 0 : index
    %46 = memref.load %arg2[%c0_23] : memref<1xf32, #tpu.memory_space<smem>>
    %47 = vector.broadcast %46 : f32 to vector<8x128xf32>
    %48 = arith.addf %45, %47 : vector<8x128xf32>
    %c0_24 = arith.constant 0 : index
    %c0_25 = arith.constant 0 : index
    %49 = vector.load %arg5[%c0_24, %c0_25] : memref<8x128xf32, #tpu.memory_space<vmem>>, vector<8x128xf32>
    tpu.vector_store %arg5[%c0_24, %c0_25], %48 {strides = array<i32>} : memref<8x128xf32, #tpu.memory_space<vmem>>, vector<8x128xf32>,
    return
  }
  func.func @transform_0(%arg0: i32) -> (i32, i32) {
    %c0_i32 = arith.constant 0 : i32
    %c0_i32_0 = arith.constant 0 : i32
    %c0_i32_1 = arith.constant 0 : i32
    return %c0_i32, %c0_i32_0 : i32, i32
  }
  func.func @transform_1(%arg0: i32) -> i32 {
    %c0_i32 = arith.constant 0 : i32
    %c0_i32_0 = arith.constant 0 : i32
    return %c0_i32 : i32
  }
  func.func @transform_2(%arg0: i32) -> (i32, i32) {
    %c0_i32 = arith.constant 0 : i32
    %c0_i32_0 = arith.constant 0 : i32
    return %arg0, %c0_i32 : i32, i32
  }
  func.func @transform_3(%arg0: i32) -> (i32, i32) {
    %c1_i32 = arith.constant 1 : i32
    %0 = arith.addi %arg0, %c1_i32 : i32
    %c1_i32_0 = arith.constant 1 : i32
    %1 = arith.muli %0, %c1_i32_0 : i32
    %c1_i32_1 = arith.constant 1 : i32
    %2 = arith.minsi %1, %c1_i32_1 : i32
    %c0_i32 = arith.constant 0 : i32
    %c0_i32_2 = arith.constant 0 : i32
    return %2, %c0_i32 : i32, i32
  }
  func.func @transform_4(%arg0: i32) -> (i32, i32) {
    %c0_i32 = arith.constant 0 : i32
    %c0_i32_0 = arith.constant 0 : i32
    return %arg0, %c0_i32 : i32, i32
  }
}

</mosaic_0001>

<llo_original>
// kernel: tpu_custom_call.1
$region0: #{tpu_custom_call.1}
  #allocation0 [shape = 'u32[]', space=smem, size = 0x4, offset = 0x4, fixed_abs, tag = 'smem constant byte address 0x4 - core index']
  #allocation1 [shape = 'u32[144,128]{1,0:T(1,128)}', space=vmem, size = 0x12000, scoped, tag = 'internal scratch']
  #allocation2 [shape = 'f32[1]{0:T(128)S(6)}', space=smem, size = 0x200, scoped, tag = 'scoped memory for tpu_custom_call.1']
  %s0 = inlined_call_operand.hbm [shape: f32[3,3], index: 0, kind: input, shape index: {}]
  %s1 = inlined_call_operand.<no memory space> [shape: f32[1], index: 1, kind: input, shape index: {}]
  %s2 = inlined_call_operand.hbm [shape: f32[16,16], index: 2, kind: input, shape index: {}]
  %s3 = inlined_call_operand.hbm [shape: f32[16,16], index: 3, kind: input, shape index: {}]
  %s4 = inlined_call_operand.hbm [shape: f32[14,14], index: 4, kind: output, shape index: {}]
  %s5 = sld [smem:[#allocation0]]
  $region61: #{tpu_custom_call.1} parent=0
    _
  %s7 = ssub.s32 1, %s5
  %s8 = scalar_select 0, %s7, %s5
  %9 = sst [smem:[#allocation2]] %s1
  $region1: #{tpu_custom_call.1} parent=0
    #allocation3 [shape = 'u8[2048]{0}', space=smem, size = 0x800, scoped, tag = 'input window, operand 0, single buffered']
    #allocation4 [shape = 's32[2]{0}', space=sflag, size = 0x8, scoped, tag = 'scoped memory for tpu_custom_call.1']
    #allocation5 [shape = 's32[2]{0}', space=sflag, size = 0x8, scoped, tag = 'scoped memory for tpu_custom_call.1']
    #allocation6 [shape = 's32[2]{0}', space=sflag, size = 0x8, scoped, tag = 'scoped memory for tpu_custom_call.1']
    #allocation7 [shape = 'u8[8192]{0}', space=vmem, size = 0x2000, scoped, tag = 'input window, operand 2']
    #allocation8 [shape = 'u8[8192]{0}', space=vmem, size = 0x2000, scoped, tag = 'input window, operand 3']
    #allocation9 [shape = 's32[2]{0}', space=sflag, size = 0x8, scoped, tag = 'scoped memory for tpu_custom_call.1']
    #allocation10 [shape = 'u8[8192]{0}', space=vmem, size = 0x2000, scoped, tag = 'output window, operand 0']
    %10 = vsyncpa [#allocation6], 0
    %11 = vsyncpa [#allocation4], 0
    %s12 = scalar_lea.sflag [#allocation4], 1
    %13 = vsyncpa %s12, 0
    %14 = vsyncpa [#allocation9], 0
    %s15 = scalar_lea.sflag [#allocation9], 1
    %16 = vsyncpa %s15, 0
    %17 = vsyncpa [#allocation5], 0
    %s18 = scalar_lea.sflag [#allocation5], 1
    %19 = vsyncpa %s18, 0
    loop: start=0, step=1, limit=4
    $region2: #{tpu_custom_call.1} parent=1 // loop_pre_header
      _
    $region3: #{tpu_custom_call.1} parent=1 // loop_header
      %s21 = sphi 0, %s25
      %p22 = scmp.ge.s32.totalorder %s21, 4
      %s29 = sphi 0, %s29
      %s31 = sphi 0, %s29
      %s32 = sphi 0, %s31
      %s46 = sphi 0, %s32
      %s50 = sphi 0, %s50
      %s52 = sphi 0, %s50
      %s53 = sphi 0, %s52
      %s67 = sphi 0, %s53
      %s73 = sphi 0, %s75
      %s76 = sphi 0, %s73
      %s77 = sphi 0, %s76
      %s93 = sphi 0, %s77
      %s105 = sphi 0, %s107
      %s108 = sphi 0, %s105
      %s109 = sphi 0, %s108
      %s125 = sphi 0, %s109
      %s131 = sphi 0, %s133
      %s134 = sphi 0, %s131
      %s135 = sphi 0, %s134
      %s151 = sphi 0, %s135
    $region4: #{tpu_custom_call.1} parent=1 // loop_header_branch
      %24 = sbr.rel (%p22) target = $region8
    $region5: #{tpu_custom_call.1} parent=1 // loop_body
      %s26 = ssub.s32 %s21, 1
      %s27 = ssub.s32 %s21, 2
      %s28 = sadd.s32 %s21, 1
      %s30 = sadd.s32 %s29, 1
      %p33 = scmp.eq.s32.totalorder %s21, 1
      %p34 = scmp.ne.s32.totalorder %s29, %s31
      %p35 = scmp.eq.s32.totalorder %s21, 0
      %p36 = por %p34, %p35
      %p37 = scmp.ne.s32.totalorder %s29, %s31
      %p38 = scmp.eq.s32.totalorder %s26, 1
      %p39 = por %p37, %p38
      %p40 = scmp.ne.s32.totalorder %s31, %s32
      %p41 = scmp.eq.s32.totalorder %s26, 0
      %p42 = por %p40, %p41
      %p43 = scmp.ne.s32.totalorder %s31, %s32
      %p44 = scmp.eq.s32.totalorder %s27, 1
      %p45 = por %p43, %p44
      %p47 = scmp.ne.s32.totalorder %s32, %s46
      %p48 = scmp.eq.s32.totalorder %s27, 0
      %p49 = por %p47, %p48
      %s51 = sadd.s32 %s50, 1
      %p54 = scmp.eq.s32.totalorder %s21, 1
      %p55 = scmp.ne.s32.totalorder %s50, %s52
      %p56 = scmp.eq.s32.totalorder %s21, 0
      %p57 = por %p55, %p56
      %p58 = scmp.ne.s32.totalorder %s50, %s52
      %p59 = scmp.eq.s32.totalorder %s26, 1
      %p60 = por %p58, %p59
      %p61 = scmp.ne.s32.totalorder %s52, %s53
      %p62 = scmp.eq.s32.totalorder %s26, 0
      %p63 = por %p61, %p62
      %p64 = scmp.ne.s32.totalorder %s52, %s53
      %p65 = scmp.eq.s32.totalorder %s27, 1
      %p66 = por %p64, %p65
      %p68 = scmp.ne.s32.totalorder %s53, %s67
      %p69 = scmp.eq.s32.totalorder %s27, 0
      %p70 = por %p68, %p69
      %s71 = ssub.s32 %s21, %s28
      %p72 = scmp.eq.s32.totalorder %s71, 0
      %s74 = sadd.s32 %s73, 1
      %s75 = scalar_select %p72, %s73, %s74
      %p78 = pneg %p72
      %p79 = scmp.eq.s32.totalorder %s21, 1
      %p80 = por %p78, %p79
      %p81 = scmp.ne.s32.totalorder %s73, %s76
      %p82 = scmp.eq.s32.totalorder %s21, 0
      %p83 = por %p81, %p82
      %p84 = scmp.ne.s32.totalorder %s73, %s76
      %p85 = scmp.eq.s32.totalorder %s26, 1
      %p86 = por %p84, %p85
      %p87 = scmp.ne.s32.totalorder %s76, %s77
      %p88 = scmp.eq.s32.totalorder %s26, 0
      %p89 = por %p87, %p88
      %p90 = scmp.ne.s32.totalorder %s76, %s77
      %p91 = scmp.eq.s32.totalorder %s27, 1
      %p92 = por %p90, %p91
      %p94 = scmp.ne.s32.totalorder %s77, %s93
      %p95 = scmp.eq.s32.totalorder %s27, 0
      %p96 = por %p94, %p95
      %s97 = sadd.s32 %s21, 1
      %p98 = scmp.lt.s32.totalorder %s97, 1
      %s99 = scalar_select %p98, %s97, 1
      %s100 = sadd.s32 %s28, 1
      %p101 = scmp.lt.s32.totalorder %s100, 1
      %s102 = scalar_select %p101, %s100, 1
      %s103 = ssub.s32 %s99, %s102
      %p104 = scmp.eq.s32.totalorder %s103, 0
      %s106 = sadd.s32 %s105, 1
      %s107 = scalar_select %p104, %s105, %s106
      %p110 = pneg %p104
      %p111 = scmp.eq.s32.totalorder %s21, 1
      %p112 = por %p110, %p111
      %p113 = scmp.ne.s32.totalorder %s105, %s108
      %p114 = scmp.eq.s32.totalorder %s21, 0
      %p115 = por %p113, %p114
      %p116 = scmp.ne.s32.totalorder %s105, %s108
      %p117 = scmp.eq.s32.totalorder %s26, 1
      %p118 = por %p116, %p117
      %p119 = scmp.ne.s32.totalorder %s108, %s109
      %p120 = scmp.eq.s32.totalorder %s26, 0
      %p121 = por %p119, %p120
      %p122 = scmp.ne.s32.totalorder %s108, %s109
      %p123 = scmp.eq.s32.totalorder %s27, 1
      %p124 = por %p122, %p123
      %p126 = scmp.ne.s32.totalorder %s109, %s125
      %p127 = scmp.eq.s32.totalorder %s27, 0
      %p128 = por %p126, %p127
      %s129 = ssub.s32 %s21, %s28
      %p130 = scmp.eq.s32.totalorder %s129, 0
      %s132 = sadd.s32 %s131, 1
      %s133 = scalar_select %p130, %s131, %s132
      %p136 = pneg %p130
      %p137 = scmp.eq.s32.totalorder %s21, 1
      %p138 = por %p136, %p137
      %p139 = scmp.ne.s32.totalorder %s131, %s134
      %p140 = scmp.eq.s32.totalorder %s21, 0
      %p141 = por %p139, %p140
      %p142 = scmp.ne.s32.totalorder %s131, %s134
      %p143 = scmp.eq.s32.totalorder %s26, 1
      %p144 = por %p142, %p143
      %p145 = scmp.ne.s32.totalorder %s134, %s135
      %p146 = scmp.eq.s32.totalorder %s26, 0
      %p147 = por %p145, %p146
      %p148 = scmp.ne.s32.totalorder %s134, %s135
      %p149 = scmp.eq.s32.totalorder %s27, 1
      %p150 = por %p148, %p149
      %p152 = scmp.ne.s32.totalorder %s135, %s151
      %p153 = scmp.eq.s32.totalorder %s27, 0
      %p154 = por %p152, %p153
      %p155 = scmp.le.s32.totalorder 1, %s21
      %p156 = scmp.lt.s32.totalorder %s21, 3
      %p157 = pnand %p155, %p156
      %p158 = pneg %p157
      // Predicated region
      $region9: #{tpu_custom_call.1} parent=5 // pred_check
        _
      $region10: #{tpu_custom_call.1} parent=5 // pred_check_branch
        %160 = sbr.rel (%p157) target = $region12
      $region11: #{tpu_custom_call.1} parent=5 // pred_region
        %s161 = ssub.s32 %s21, 1
        // Predicated region
        $region13: #{tpu_custom_call.1} parent=11 // pred_check
          %p162 = pneg %p42
        $region14: #{tpu_custom_call.1} parent=11 // pred_check_branch
          %164 = sbr.rel (%p162) target = $region16
        $region15: #{tpu_custom_call.1} parent=11 // pred_region
          %s166 = ssub.s32 64, 64
          %167 = vsyncadd [#allocation6], %s166
          %170 = dma.hbm_to_smem %s0, 64, [#allocation3], [#allocation6]
        $region16: #{tpu_custom_call.1} parent=11 // pred_fallthru
          _
        // Predicated region
        $region17: #{tpu_custom_call.1} parent=11 // pred_check
          %p171 = pneg %p63
        $region18: #{tpu_custom_call.1} parent=11 // pred_check_branch
          %173 = sbr.rel (%p171) target = $region20
        $region19: #{tpu_custom_call.1} parent=11 // pred_region
          _
        $region20: #{tpu_custom_call.1} parent=11 // pred_fallthru
          _
      $region12: #{tpu_custom_call.1} parent=5 // pred_fallthru
        _
      %p174 = scmp.lt.s32.totalorder %s21, 2
      // Predicated region
      $region21: #{tpu_custom_call.1} parent=5 // pred_check
        %p175 = pneg %p174
      $region22: #{tpu_custom_call.1} parent=5 // pred_check_branch
        %177 = sbr.rel (%p175) target = $region24
      $region23: #{tpu_custom_call.1} parent=5 // pred_region
        // Predicated region
        $region25: #{tpu_custom_call.1} parent=23 // pred_check
          %p178 = pneg %p83
        $region26: #{tpu_custom_call.1} parent=23 // pred_check_branch
          %180 = sbr.rel (%p178) target = $region28
        $region27: #{tpu_custom_call.1} parent=23 // pred_region
          %s181 = sand.u32 %s73, 1
          %s182 = scalar_lea.sflag [#allocation4], %s181
          %s183 = sand.u32 %s73, 1
          %s184 = smul.addr %s183, 8
          %s185 = scalar_lea.vmem [#allocation7], %s184
          %s187 = ssub.s32 128, 128
          %188 = vsyncadd %s182, %s187
          %s189 = smul.addr %s21, 128
          %s190 = scalar_lea.hbm %s2, %s189
          %s192 = sshll.u32 %s185, 4
          %s193 = int_to_ptr.vmem [resolvable:$true] %s192
          %195 = dma.hbm_to_vmem [thread:$0]  %s190, 128, %s193, %s182
        $region28: #{tpu_custom_call.1} parent=23 // pred_fallthru
          _
        // Predicated region
        $region29: #{tpu_custom_call.1} parent=23 // pred_check
          %p196 = pneg %p115
        $region30: #{tpu_custom_call.1} parent=23 // pred_check_branch
          %198 = sbr.rel (%p196) target = $region32
        $region31: #{tpu_custom_call.1} parent=23 // pred_region
          %s199 = sand.u32 %s105, 1
          %s200 = scalar_lea.sflag [#allocation9], %s199
          %s201 = sand.u32 %s105, 1
          %s202 = smul.addr %s201, 8
          %s203 = scalar_lea.vmem [#allocation8], %s202
          %s204 = sadd.s32 %s21, 1
          %p205 = scmp.lt.s32.totalorder %s204, 1
          %s206 = scalar_select %p205, %s204, 1
          %s208 = ssub.s32 128, 128
          %209 = vsyncadd %s200, %s208
          %s210 = smul.addr %s206, 128
          %s211 = scalar_lea.hbm %s3, %s210
          %s213 = sshll.u32 %s203, 4
          %s214 = int_to_ptr.vmem [resolvable:$true] %s213
          %216 = dma.hbm_to_vmem [thread:$0]  %s211, 128, %s214, %s200
        $region32: #{tpu_custom_call.1} parent=23 // pred_fallthru
          _
      $region24: #{tpu_custom_call.1} parent=5 // pred_fallthru
        _
      %p217 = scmp.le.s32.totalorder 1, %s21
      %p218 = scmp.lt.s32.totalorder %s21, 3
      %p219 = pnand %p217, %p218
      %p220 = pneg %p219
      // Predicated region
      $region33: #{tpu_custom_call.1} parent=5 // pred_check
        _
      $region34: #{tpu_custom_call.1} parent=5 // pred_check_branch
        %222 = sbr.rel (%p219) target = $region36
      $region35: #{tpu_custom_call.1} parent=5 // pred_region
        %s223 = ssub.s32 %s21, 1
        // Predicated region
        $region37: #{tpu_custom_call.1} parent=35 // pred_check
          %p224 = pneg %p42
        $region38: #{tpu_custom_call.1} parent=35 // pred_check_branch
          %226 = sbr.rel (%p224) target = $region40
        $region39: #{tpu_custom_call.1} parent=35 // pred_region
          %227 = dma.done [#allocation6], 64
        $region40: #{tpu_custom_call.1} parent=35 // pred_fallthru
          _
        %s228 = sand.u32 %s76, 1
        %s229 = scalar_lea.sflag [#allocation4], %s228
        %s230 = sand.u32 %s76, 1
        %s231 = smul.addr %s230, 8
        %s232 = scalar_lea.vmem [#allocation7], %s231
        // Predicated region
        $region41: #{tpu_custom_call.1} parent=35 // pred_check
          %p233 = pneg %p89
        $region42: #{tpu_custom_call.1} parent=35 // pred_check_branch
          %235 = sbr.rel (%p233) target = $region44
        $region43: #{tpu_custom_call.1} parent=35 // pred_region
          %236 = dma.done %s229, 128
        $region44: #{tpu_custom_call.1} parent=35 // pred_fallthru
          _
        %s237 = sand.u32 %s108, 1
        %s238 = scalar_lea.sflag [#allocation9], %s237
        %s239 = sand.u32 %s108, 1
        %s240 = smul.addr %s239, 8
        %s241 = scalar_lea.vmem [#allocation8], %s240
        // Predicated region
        $region45: #{tpu_custom_call.1} parent=35 // pred_check
          %p242 = pneg %p121
        $region46: #{tpu_custom_call.1} parent=35 // pred_check_branch
          %244 = sbr.rel (%p242) target = $region48
        $region47: #{tpu_custom_call.1} parent=35 // pred_region
          %245 = dma.done %s238, 128
        $region48: #{tpu_custom_call.1} parent=35 // pred_fallthru
          _
        %246 = sfence
        %p247 = pneg %p42
        %p248 = pneg %p39
        %p249 = pneg %p63
        %p250 = pneg %p60
        %s251 = sand.u32 %s76, 1
        %s252 = scalar_lea.sflag [#allocation4], %s251
        %s253 = sand.u32 %s76, 1
        %s254 = smul.addr %s253, 8
        %s255 = scalar_lea.vmem [#allocation7], %s254
        %p256 = pneg %p89
        %p257 = pneg %p86
        %s258 = sand.u32 %s108, 1
        %s259 = scalar_lea.sflag [#allocation9], %s258
        %s260 = sand.u32 %s108, 1
        %s261 = smul.addr %s260, 8
        %s262 = scalar_lea.vmem [#allocation8], %s261
        %p263 = pneg %p121
        %p264 = pneg %p118
        %p265 = pneg %p147
        %p266 = pneg %p144
        %s267 = sand.u32 %s134, 1
        %s268 = scalar_lea.sflag [#allocation5], %s267
        %s269 = sand.u32 %s134, 1
        %s270 = smul.addr %s269, 8
        %s271 = scalar_lea.vmem [#allocation10], %s270
        %s272 = sadd.s32 %s26, 1
        %p273 = scmp.lt.s32.totalorder %s272, 1
        %s274 = scalar_select %p273, %s272, 1
        %v275 = vld [vmem:[%s232] sm:$0xff]
        %v276 = vld [vmem:[%s241] sm:$0xff]
        %s277 = sld [smem:[#allocation3]]
        %v278 = vstv %s277
        %v279 = vmul.f32 %v275, %v278
        %280 = vrot.lane.b32.xlu0 %v275, 127
        %v281 = vpop.permute.xlu0 %280
        %s282 = sld [smem:[#allocation3 + $0x1]]
        %v283 = vstv %s282
        %v284 = vmul.f32 %v281, %v283
        %v285 = vadd.f32 %v279, %v284
        %286 = vrot.lane.b32.xlu0 %v275, 126
        %v287 = vpop.permute.xlu0 %286
        %s288 = sld [smem:[#allocation3 + $0x2]]
        %v289 = vstv %s288
        %v290 = vmul.f32 %v287, %v289
        %v291 = vadd.f32 %v285, %v290
        %s292 = sld [smem:[#allocation3 + $0x80]]
        %v293 = vstv %s292
        %v294 = vmul.f32 %v275, %v293
        %v295 = vmul.f32 %v276, %v293
        %vm298 = vcmask 1046528
        %v299 = vrot.slane %v294, 1
        %v300 = vrot.slane %v295, 1
        %v301 = vsel %vm298, %v299, %v300
        %v303 = vadd.f32 %v291, %v301
        %v306 = vrot.slane %v275, 1
        %v307 = vrot.slane %v276, 1
        %v308 = vsel %vm298, %v306, %v307
        %310 = vrot.lane.b32.xlu0 %v308, 127
        %v311 = vpop.permute.xlu0 %310
        %s312 = sld [smem:[#allocation3 + $0x81]]
        %v313 = vstv %s312
        %v314 = vmul.f32 %v311, %v313
        %v315 = vadd.f32 %v303, %v314
        %316 = vrot.lane.b32.xlu0 %v308, 126
        %v317 = vpop.permute.xlu0 %316
        %s318 = sld [smem:[#allocation3 + $0x82]]
        %v319 = vstv %s318
        %v320 = vmul.f32 %v317, %v319
        %v321 = vadd.f32 %v315, %v320
        %s322 = sld [smem:[#allocation3 + $0x100]]
        %v323 = vstv %s322
        %v324 = vmul.f32 %v275, %v323
        %v325 = vmul.f32 %v276, %v323
        %vm328 = vcmask 1045504
        %v329 = vrot.slane %v324, 2
        %v330 = vrot.slane %v325, 2
        %v331 = vsel %vm328, %v329, %v330
        %v333 = vadd.f32 %v321, %v331
        %v334 = vrot.slane %v275, 2
        %v335 = vrot.slane %v276, 2
        %v336 = vsel %vm328, %v334, %v335
        %338 = vrot.lane.b32.xlu0 %v336, 127
        %v339 = vpop.permute.xlu0 %338
        %s340 = sld [smem:[#allocation3 + $0x101]]
        %v341 = vstv %s340
        %v342 = vmul.f32 %v339, %v341
        %v343 = vadd.f32 %v333, %v342
        %344 = vrot.lane.b32.xlu0 %v336, 126
        %v345 = vpop.permute.xlu0 %344
        %s346 = sld [smem:[#allocation3 + $0x102]]
        %v347 = vstv %s346
        %v348 = vmul.f32 %v345, %v347
        %v349 = vadd.f32 %v343, %v348
        %s350 = sld [smem:[#allocation2]]
        %v351 = vstv %s350
        %v352 = vadd.f32 %v349, %v351
        %353 = vst [vmem:[%s271] sm:$0xff] %v352
        %s354 = sand.u32 %s134, 1
        %s355 = scalar_lea.sflag [#allocation5], %s354
        %s356 = sand.u32 %s134, 1
        %s357 = smul.addr %s356, 8
        %s358 = scalar_lea.vmem [#allocation10], %s357
        // Predicated region
        $region49: #{tpu_custom_call.1} parent=35 // pred_check
          %p359 = pneg %p144
        $region50: #{tpu_custom_call.1} parent=35 // pred_check_branch
          %361 = sbr.rel (%p359) target = $region52
        $region51: #{tpu_custom_call.1} parent=35 // pred_region
          %s363 = ssub.s32 128, 128
          %364 = vsyncadd %s355, %s363
          %s365 = smul.addr %s26, 128
          %s366 = scalar_lea.hbm %s4, %s365
          %s368 = sshll.u32 %s358, 4
          %s369 = int_to_ptr.vmem [resolvable:$true] %s368
          %371 = dma.vmem_to_hbm [thread:$0]  %s369, 128, %s366, %s355
        $region52: #{tpu_custom_call.1} parent=35 // pred_fallthru
          _
      $region36: #{tpu_custom_call.1} parent=5 // pred_fallthru
        _
      %p372 = scmp.le.s32.totalorder 2, %s21
      // Predicated region
      $region53: #{tpu_custom_call.1} parent=5 // pred_check
        %p373 = pneg %p372
      $region54: #{tpu_custom_call.1} parent=5 // pred_check_branch
        %375 = sbr.rel (%p373) target = $region56
      $region55: #{tpu_custom_call.1} parent=5 // pred_region
        %s376 = ssub.s32 %s21, 2
        // Predicated region
        $region57: #{tpu_custom_call.1} parent=55 // pred_check
          %p377 = pneg %p150
        $region58: #{tpu_custom_call.1} parent=55 // pred_check_branch
          %379 = sbr.rel (%p377) target = $region60
        $region59: #{tpu_custom_call.1} parent=55 // pred_region
          %s380 = sand.u32 %s135, 1
          %s381 = scalar_lea.sflag [#allocation5], %s380
          %s382 = sand.u32 %s135, 1
          %s383 = smul.addr %s382, 8
          %s384 = scalar_lea.vmem [#allocation10], %s383
          %385 = dma.done %s381, 128
        $region60: #{tpu_custom_call.1} parent=55 // pred_fallthru
          _
      $region56: #{tpu_custom_call.1} parent=5 // pred_fallthru
        _
    $region6: #{tpu_custom_call.1} parent=1 // loop_footer
      %s25 = sadd.s32 1, %s21
    $region7: #{tpu_custom_call.1} parent=1 // loop_footer_branch
      %20 = sbr.rel target = $region3
    $region8: #{tpu_custom_call.1} parent=1 // loop_exit
      _
    %386 = vsyncpa [#allocation4], 1
    %s387 = scalar_lea.sflag [#allocation4], 1
    %388 = vsyncpa %s387, 1
    %389 = vsyncpa [#allocation9], 1
    %s390 = scalar_lea.sflag [#allocation9], 1
    %391 = vsyncpa %s390, 1
    %392 = vsyncpa [#allocation5], 1
    %s393 = scalar_lea.sflag [#allocation5], 1
    %394 = vsyncpa %s393, 1
    %395 = vsyncpa [#allocation6], 1
    %s396 = scalar_lea.sflag [#allocation6], 1
    %397 = vsyncpa %s396, 1

</llo_original>
